<compile_context>
chip_gen: v7x
topology: tpu7x:2x2x1
jax: 0.10.0
libtpu: 0.0.40
codegen_flags: <defaults>
</compile_context>

<pallas_src>
import jax
import jax.numpy as jnp
from jax.experimental import pallas as pl
from jax.experimental.pallas import tpu as pltpu

EPS = 1e-15
_MiB = 1024 * 1024


def fetch_assign_matrix(random, dim1, dim2, key):
    """JAX equivalent of the torch fetch_assign_matrix (deterministic via key)."""
    if random == "normal":
        m = jax.random.normal(key, (dim1, dim2), dtype=jnp.float32)
    elif random == "bernoulli":
        m = jax.random.bernoulli(key, 0.25, (dim1, dim2)).astype(jnp.float32)
    elif random == "categorical":
        idxs = jax.random.categorical(key, jnp.zeros((dim1, dim2)), axis=-1)
        m = jax.nn.one_hot(idxs, dim2, dtype=jnp.float32)
    else:
        m = jax.random.uniform(key, (dim1, dim2), dtype=jnp.float32)
    return m


def _tpu_vmem_and_cores():
    """Per-TensorCore VMEM capacity and TensorCores/chip (safe fallbacks)."""
    vmem = 64 * _MiB  # v7x-sized fallback: conservative on every generation
    try:
        vmem = int(pltpu.get_tpu_info().vmem_capacity_bytes)
    except Exception:
        pass
    # v7x is the 64 MiB-VMEM generation and the only one with 2 TCs per chip;
    # v5e / v6e have 128 MiB and a single TensorCore.
    cores = 2 if vmem <= 64 * _MiB else 1
    return vmem, cores


def _pick_batch_block(B, N, F, C, x_itemsize, adj_itemsize, out_itemsize,
                      budget_bytes):
    """Largest batch block whose working set fits the per-generation budget."""
    f32 = 4
    # HBM<->VMEM tiles are double-buffered by the BlockSpec pipeline.
    io_per_b = (x_itemsize * N * F                       # x
                + adj_itemsize * N * N                   # adj (bf16 halves this)
                + x_itemsize * N                         # mask
                + out_itemsize * (C * F + C * C + 2 * C * N))   # 4 outputs
    # f32 values resident once per block: adj upcast, s_t, m_cn, m_nc_t, tmp,
    # c_x, c_adj.
    live_per_b = f32 * (N * N + 4 * C * N + C * F + C * C)
    per_b = 2 * io_per_b + live_per_b
    fixed = 2 * f32 * C * N + 2 * _MiB                   # shared rm_t + headroom
    return max(1, min(B, (budget_bytes - fixed) // per_b))


def _largest_divisor_leq(n, cap):
    """Largest divisor of n that is <= cap (so no batch padding is needed)."""
    cap = max(1, min(n, cap))
    for d in range(cap, 0, -1):
        if n % d == 0:
            return d
    return 1


def _random_pool_kernel(rm_t_ref, x_ref, adj_ref, mask_ref,
                        cx_ref, cadj_ref, mnct_ref, mcn_ref):
    """One batch block per grid step; everything in cluster-major (C, N) layout."""
    rm_t = rm_t_ref[...]            # (C, N)   shared random assignment matrix^T
    mask = mask_ref[...]            # (TB, 1, N)

    # s^T = relu(rm^T * mask): (TB, C, N); the mask broadcast is along the
    # C (sublane) axis, the node axis stays on lanes.
    s_t = jnp.maximum(rm_t[None, :, :] * mask, 0.0)

    # Exact reciprocals: the kernel is HBM-bound on the adj read, so the
    # precise path costs no wall-clock and keeps full f32 parity.
    inv_n = pl.reciprocal(jnp.sum(s_t, axis=-1, keepdims=True) + EPS, approx=False)
    m_cn = s_t * inv_n                                             # (TB, C, N)
    inv_c = pl.reciprocal(jnp.sum(s_t, axis=-2, keepdims=True) + EPS, approx=False)
    m_nc_t = s_t * inv_c                                           # (TB, C, N), m_nc^T

    x = x_ref[...]                                                 # (TB, N, F)
    # adj arrives in the caller's dtype (ideally bf16: 0/1 values are exact
    # and the dominant HBM read is halved); upcast once in VMEM and keep all
    # MXU accumulation in f32.
    adj = adj_ref[...].astype(jnp.float32)                         # (TB, N, N)

    c_x = jnp.einsum("bcn,bnf->bcf", m_cn, x,
                     preferred_element_type=jnp.float32)           # (TB, C, F)
    tmp = jnp.einsum("bcn,bnm->bcm", m_cn, adj,
                     preferred_element_type=jnp.float32)           # (TB, C, N)
    # m_nc^T consumed as a transposed contraction (contract over its last dim)
    # so no in-kernel transpose is materialized.
    c_adj = jnp.einsum("bcm,bdm->bcd", tmp, m_nc_t,
                       preferred_element_type=jnp.float32)         # (TB, C, C)

    cx_ref[...] = c_x.astype(cx_ref.dtype)
    cadj_ref[...] = c_adj.astype(cadj_ref.dtype)
    mnct_ref[...] = m_nc_t.astype(mnct_ref.dtype)
    mcn_ref[...] = m_cn.astype(mcn_ref.dtype)


@jax.jit
def random_pool_forward(rm, x, adj, mask):
    """RandomPool forward: returns (c_x, c_adj, m_nc, m_cn, loss)."""
    B, N, F = x.shape
    C = rm.shape[1]
    dtype = x.dtype

    # Cluster-major inputs (one-time tiny XLA transpose / reshape).
    rm_t = jnp.transpose(rm[:N, :]).astype(dtype)          # (C, N)
    mask3 = mask[:, None, :].astype(dtype)                 # (B, 1, N)

    # Generation-aware VMEM sizing: ~100 MiB-class tiling on v5e/v6e
    # (128 MiB VMEM), ~52 MiB with headroom on v7x (64 MiB VMEM, 2 TCs).
    vmem_cap, num_cores = _tpu_vmem_and_cores()
    vmem_limit = int(min(vmem_cap - 12 * _MiB, 100 * _MiB))
    vmem_budget = vmem_limit - 4 * _MiB

    tb_cap = _pick_batch_block(
        B, N, F, C,
        x_itemsize=jnp.dtype(dtype).itemsize,
        adj_itemsize=jnp.dtype(adj.dtype).itemsize,
        out_itemsize=jnp.dtype(dtype).itemsize,
        budget_bytes=vmem_budget)
    if num_cores >= 2 and B >= 2:
        # v7x megacore: keep >= 2 grid steps so the "parallel" batch axis
        # gives both TensorCores work.
        tb_cap = min(tb_cap, B // 2)
    # Batch block chosen from the divisors of B: the ragged case never occurs,
    # so no jnp.pad copy of x/adj/mask (an extra HBM pass over the dominant
    # tensor) is ever materialized.
    tb = _largest_divisor_leq(B, tb_cap)
    num_blocks = B // tb

    out_shapes = (
        jax.ShapeDtypeStruct((B, C, F), dtype),    # c_x
        jax.ShapeDtypeStruct((B, C, C), dtype),    # c_adj
        jax.ShapeDtypeStruct((B, C, N), dtype),    # m_nc^T (kernel-native layout)
        jax.ShapeDtypeStruct((B, C, N), dtype),    # m_cn
    )

    c_x, c_adj, m_nc_t, m_cn = pl.pallas_call(
        _random_pool_kernel,
        out_shape=out_shapes,
        grid=(num_blocks,),
        in_specs=[
            pl.BlockSpec((C, N), lambda b: (0, 0)),           # rm^T (shared)
            pl.BlockSpec((tb, N, F), lambda b: (b, 0, 0)),    # x
            pl.BlockSpec((tb, N, N), lambda b: (b, 0, 0)),    # adj (caller dtype)
            pl.BlockSpec((tb, 1, N), lambda b: (b, 0, 0)),    # mask
        ],
        out_specs=[
            pl.BlockSpec((tb, C, F), lambda b: (b, 0, 0)),
            pl.BlockSpec((tb, C, C), lambda b: (b, 0, 0)),
            pl.BlockSpec((tb, C, N), lambda b: (b, 0, 0)),
            pl.BlockSpec((tb, C, N), lambda b: (b, 0, 0)),
        ],
        compiler_params=pltpu.CompilerParams(
            dimension_semantics=("parallel",),
            vmem_limit_bytes=vmem_limit,
        ),
    )(rm_t, x, adj, mask3)

    # (B, N, C) layout is required by the module's contract; this transpose is
    # the only post-kernel data movement left.
    m_nc = jnp.transpose(m_nc_t, (0, 2, 1))
    loss = jnp.zeros((1,), dtype)              # torch: x.new_zeros(1) -> exactly 0
    return c_x, c_adj, m_nc, m_cn, loss


def _reference(rm, x, adj, mask):
    """Pure-JAX reference mirroring the torch forward."""
    B, N, _ = x.shape
    s = jnp.broadcast_to(rm[:N, :], (B,) + rm[:N, :].shape)
    s = s * mask[:, :, None]
    s = jnp.maximum(s, 0.0)
    m_nc = s / (jnp.sum(s, axis=-1, keepdims=True) + EPS)
    st = jnp.swapaxes(s, -2, -1)
    m_cn = st / (jnp.sum(st, axis=-1, keepdims=True) + EPS)
    c_x = jnp.matmul(m_cn, x)
    c_adj = jnp.matmul(jnp.matmul(m_cn, adj.astype(x.dtype)), m_nc)
    return c_x, c_adj, m_nc, m_cn, jnp.zeros((1,), x.dtype)


if __name__ == "__main__":
    key = jax.random.PRNGKey(0)
    k_rm, k_x, k_adj, k_mask = jax.random.split(key, 4)

    B, N, F, C = 2, 16, 32, 4          # batch, max_num_nodes, features, num_cluster
    pooling_type = "uniform"           # falls through to the torch.rand branch

    rm = fetch_assign_matrix(pooling_type, N, C, k_rm)          # (max_num_nodes, C)
    x = jax.random.normal(k_x, (B, N, F), dtype=jnp.float32)
    # adj is a 0/1 matrix: store it in bf16 (exact for 0/1) so the kernel's
    # dominant (B, N, N) HBM read is half the bytes.
    adj = (jax.random.uniform(k_adj, (B, N, N)) > 0.5).astype(jnp.bfloat16)
    mask = (jax.random.uniform(k_mask, (B, N)) > 0.25).astype(jnp.float32)

    outs = jax.block_until_ready(random_pool_forward(rm, x, adj, mask))

    refs = _reference(rm, x, adj, mask)
    names = ("c_x", "c_adj", "m_nc", "m_cn", "loss")
    for name, o, r in zip(names, outs, refs):
        assert o.shape == r.shape, f"{name}: shape {o.shape} vs {r.shape}"
        # Tight tolerance: all kernel math is f32 (exact reciprocal, f32 MXU
        # accumulation); the bf16 adj holds 0/1 exactly.
        assert jnp.allclose(o, r, atol=1e-5, rtol=1e-4), f"mismatch vs reference: {name}"

    print("KERNEL_OK")
</pallas_src>

<mosaic_0001>
module attributes {stable_mosaic.version = 11 : i64} {
  func.func @_random_pool_kernel(%arg0: i32, %arg1: memref<4x16xf32, #tpu.memory_space<vmem>>, %arg2: memref<1x16x32xf32, #tpu.memory_space<vmem>>, %arg3: memref<1x16x16xbf16, #tpu.memory_space<vmem>>, %arg4: memref<1x1x16xf32, #tpu.memory_space<vmem>>, %arg5: memref<1x4x32xf32, #tpu.memory_space<vmem>>, %arg6: memref<1x4x4xf32, #tpu.memory_space<vmem>>, %arg7: memref<1x4x16xf32, #tpu.memory_space<vmem>>, %arg8: memref<1x4x16xf32, #tpu.memory_space<vmem>>) attributes {dimension_semantics = [#tpu.dimension_semantics<parallel>], iteration_bounds = array<i64: 2>, scalar_prefetch = 0 : i64, scratch_operands = 0 : i64, tpu.core_type = #tpu.core_type<tc>, window_params = [{pipeline_mode = #tpu.pipeline_mode<synchronous>, transform_indices = @transform_0, window_bounds = array<i64: 4, 16>}, {transform_indices = @transform_1, window_bounds = array<i64: 1, 16, 32>}, {transform_indices = @transform_2, window_bounds = array<i64: 1, 16, 16>}, {transform_indices = @transform_3, window_bounds = array<i64: 1, 1, 16>}, {transform_indices = @transform_4, window_bounds = array<i64: 1, 4, 32>}, {transform_indices = @transform_5, window_bounds = array<i64: 1, 4, 4>}, {transform_indices = @transform_6, window_bounds = array<i64: 1, 4, 16>}, {transform_indices = @transform_7, window_bounds = array<i64: 1, 4, 16>}]} {
    %c0 = arith.constant 0 : index
    %c0_0 = arith.constant 0 : index
    %0 = vector.load %arg1[%c0, %c0_0] : memref<4x16xf32, #tpu.memory_space<vmem>>, vector<4x16xf32>
    %c0_1 = arith.constant 0 : index
    %c0_2 = arith.constant 0 : index
    %c0_3 = arith.constant 0 : index
    %1 = vector.load %arg4[%c0_1, %c0_2, %c0_3] : memref<1x1x16xf32, #tpu.memory_space<vmem>>, vector<1x1x16xf32>
    %2 = vector.shape_cast %0 : vector<4x16xf32> to vector<1x4x16xf32>
    %3 = vector.broadcast %1 : vector<1x1x16xf32> to vector<1x4x16xf32>
    %4 = arith.mulf %2, %3 : vector<1x4x16xf32>
    %cst = arith.constant 0.000000e+00 : f32
    %5 = vector.broadcast %cst : f32 to vector<1x4x16xf32>
    %6 = arith.maximumf %4, %5 : vector<1x4x16xf32>
    %cst_4 = arith.constant dense<0.000000e+00> : vector<1x4xf32>
    %7 = vector.multi_reduction <add>, %6, %cst_4 [2] : vector<1x4x16xf32> to vector<1x4xf32>
    %8 = vector.shape_cast %7 : vector<1x4xf32> to vector<1x4x1xf32>
    %cst_5 = arith.constant 1.000000e-15 : f32
    %9 = vector.broadcast %cst_5 : f32 to vector<1x4x1xf32>
    %10 = arith.addf %8, %9 : vector<1x4x1xf32>
    %11 = tpu.reciprocal %10 : vector<1x4x1xf32> -> vector<1x4x1xf32>
    %12 = vector.broadcast %11 : vector<1x4x1xf32> to vector<1x4x16xf32>
    %13 = arith.mulf %6, %12 : vector<1x4x16xf32>
    %cst_6 = arith.constant dense<0.000000e+00> : vector<1x16xf32>
    %14 = vector.multi_reduction <add>, %6, %cst_6 [1] : vector<1x4x16xf32> to vector<1x16xf32>
    %15 = vector.shape_cast %14 : vector<1x16xf32> to vector<1x1x16xf32>
    %cst_7 = arith.constant 1.000000e-15 : f32
    %16 = vector.broadcast %cst_7 : f32 to vector<1x1x16xf32>
    %17 = arith.addf %15, %16 : vector<1x1x16xf32>
    %18 = tpu.reciprocal %17 : vector<1x1x16xf32> -> vector<1x1x16xf32>
    %19 = vector.broadcast %18 : vector<1x1x16xf32> to vector<1x4x16xf32>
    %20 = arith.mulf %6, %19 : vector<1x4x16xf32>
    %c0_8 = arith.constant 0 : index
    %c0_9 = arith.constant 0 : index
    %c0_10 = arith.constant 0 : index
    %21 = vector.load %arg2[%c0_8, %c0_9, %c0_10] : memref<1x16x32xf32, #tpu.memory_space<vmem>>, vector<1x16x32xf32>
    %c0_11 = arith.constant 0 : index
    %c0_12 = arith.constant 0 : index
    %c0_13 = arith.constant 0 : index
    %22 = vector.load %arg3[%c0_11, %c0_12, %c0_13] : memref<1x16x16xbf16, #tpu.memory_space<vmem>>, vector<1x16x16xbf16>
    %23 = arith.extf %22 : vector<1x16x16xbf16> to vector<1x16x16xf32>
    "tpu.trace_start"() <{level = 10 : i32, message = "bcn,bnf->bcf"}> : () -> ()
    %cst_14 = arith.constant dense<0.000000e+00> : vector<1x4x32xf32>
    %24 = tpu.matmul %13, %21, %cst_14 {dimension_numbers = #tpu.dot_dimension_numbers<[2], [1], [1], [2], [0, 0, 0, 1, 1, 2], [0], [0]>} : vector<1x4x16xf32>, vector<1x16x32xf32>, vector<1x4x32xf32> -> vector<1x4x32xf32>
    "tpu.trace_stop"() : () -> ()
    "tpu.trace_start"() <{level = 10 : i32, message = "bcn,bnm->bcm"}> : () -> ()
    %cst_15 = arith.constant dense<0.000000e+00> : vector<1x4x16xf32>
    %25 = tpu.matmul %13, %23, %cst_15 {dimension_numbers = #tpu.dot_dimension_numbers<[2], [1], [1], [2], [0, 0, 0, 1, 1, 2], [0], [0]>} : vector<1x4x16xf32>, vector<1x16x16xf32>, vector<1x4x16xf32> -> vector<1x4x16xf32>
    "tpu.trace_stop"() : () -> ()
    "tpu.trace_start"() <{level = 10 : i32, message = "bcm,bdm->bcd"}> : () -> ()
    %cst_16 = arith.constant dense<0.000000e+00> : vector<1x4x4xf32>
    %26 = tpu.matmul %25, %20, %cst_16 {dimension_numbers = #tpu.dot_dimension_numbers<[2], [2], [1], [1], [0, 0, 0, 1, 1, 1], [0], [0]>} : vector<1x4x16xf32>, vector<1x4x16xf32>, vector<1x4x4xf32> -> vector<1x4x4xf32>
    "tpu.trace_stop"() : () -> ()
    %c0_17 = arith.constant 0 : index
    %c0_18 = arith.constant 0 : index
    %c0_19 = arith.constant 0 : index
    %27 = vector.load %arg5[%c0_17, %c0_18, %c0_19] : memref<1x4x32xf32, #tpu.memory_space<vmem>>, vector<1x4x32xf32>
    tpu.vector_store %arg5[%c0_17, %c0_18, %c0_19], %24 {strides = array<i32>} : memref<1x4x32xf32, #tpu.memory_space<vmem>>, vector<1x4x32xf32>,
    %c0_20 = arith.constant 0 : index
    %c0_21 = arith.constant 0 : index
    %c0_22 = arith.constant 0 : index
    %28 = vector.load %arg6[%c0_20, %c0_21, %c0_22] : memref<1x4x4xf32, #tpu.memory_space<vmem>>, vector<1x4x4xf32>
    tpu.vector_store %arg6[%c0_20, %c0_21, %c0_22], %26 {strides = array<i32>} : memref<1x4x4xf32, #tpu.memory_space<vmem>>, vector<1x4x4xf32>,
    %c0_23 = arith.constant 0 : index
    %c0_24 = arith.constant 0 : index
    %c0_25 = arith.constant 0 : index
    %29 = vector.load %arg7[%c0_23, %c0_24, %c0_25] : memref<1x4x16xf32, #tpu.memory_space<vmem>>, vector<1x4x16xf32>
    tpu.vector_store %arg7[%c0_23, %c0_24, %c0_25], %20 {strides = array<i32>} : memref<1x4x16xf32, #tpu.memory_space<vmem>>, vector<1x4x16xf32>,
    %c0_26 = arith.constant 0 : index
    %c0_27 = arith.constant 0 : index
    %c0_28 = arith.constant 0 : index
    %30 = vector.load %arg8[%c0_26, %c0_27, %c0_28] : memref<1x4x16xf32, #tpu.memory_space<vmem>>, vector<1x4x16xf32>
    tpu.vector_store %arg8[%c0_26, %c0_27, %c0_28], %13 {strides = array<i32>} : memref<1x4x16xf32, #tpu.memory_space<vmem>>, vector<1x4x16xf32>,
    return
  }
  func.func @transform_0(%arg0: i32) -> (i32, i32) {
    %c0_i32 = arith.constant 0 : i32
    %c0_i32_0 = arith.constant 0 : i32
    %c0_i32_1 = arith.constant 0 : i32
    return %c0_i32, %c0_i32_0 : i32, i32
  }
  func.func @transform_1(%arg0: i32) -> (i32, i32, i32) {
    %c0_i32 = arith.constant 0 : i32
    %c0_i32_0 = arith.constant 0 : i32
    %c0_i32_1 = arith.constant 0 : i32
    return %arg0, %c0_i32, %c0_i32_0 : i32, i32, i32
  }
  func.func @transform_2(%arg0: i32) -> (i32, i32, i32) {
    %c0_i32 = arith.constant 0 : i32
    %c0_i32_0 = arith.constant 0 : i32
    %c0_i32_1 = arith.constant 0 : i32
    return %arg0, %c0_i32, %c0_i32_0 : i32, i32, i32
  }
  func.func @transform_3(%arg0: i32) -> (i32, i32, i32) {
    %c0_i32 = arith.constant 0 : i32
    %c0_i32_0 = arith.constant 0 : i32
    %c0_i32_1 = arith.constant 0 : i32
    return %arg0, %c0_i32, %c0_i32_0 : i32, i32, i32
  }
  func.func @transform_4(%arg0: i32) -> (i32, i32, i32) {
    %c0_i32 = arith.constant 0 : i32
    %c0_i32_0 = arith.constant 0 : i32
    %c0_i32_1 = arith.constant 0 : i32
    return %arg0, %c0_i32, %c0_i32_0 : i32, i32, i32
  }
  func.func @transform_5(%arg0: i32) -> (i32, i32, i32) {
    %c0_i32 = arith.constant 0 : i32
    %c0_i32_0 = arith.constant 0 : i32
    %c0_i32_1 = arith.constant 0 : i32
    return %arg0, %c0_i32, %c0_i32_0 : i32, i32, i32
  }
  func.func @transform_6(%arg0: i32) -> (i32, i32, i32) {
    %c0_i32 = arith.constant 0 : i32
    %c0_i32_0 = arith.constant 0 : i32
    %c0_i32_1 = arith.constant 0 : i32
    return %arg0, %c0_i32, %c0_i32_0 : i32, i32, i32
  }
  func.func @transform_7(%arg0: i32) -> (i32, i32, i32) {
    %c0_i32 = arith.constant 0 : i32
    %c0_i32_0 = arith.constant 0 : i32
    %c0_i32_1 = arith.constant 0 : i32
    return %arg0, %c0_i32, %c0_i32_0 : i32, i32, i32
  }
}

</mosaic_0001>

<llo_original>
// kernel: random_pool_forward.1
$region0: #{random_pool_forward.1}
  #allocation0 [shape = 'u32[]', space=smem, size = 0x4, offset = 0x4, fixed_abs, tag = 'smem constant byte address 0x4 - core index']
  #allocation1 [shape = 'u32[144,128]{1,0:T(1,128)}', space=vmem, size = 0x12000, scoped, tag = 'internal scratch']
  %s0 = inlined_call_operand.vmem [shape: f32[4,16], index: 0, kind: input, shape index: {}]
  %s1 = inlined_call_operand.hbm [shape: f32[2,16,32], index: 1, kind: input, shape index: {}]
  %s2 = inlined_call_operand.hbm [shape: bf16[2,16,16], index: 2, kind: input, shape index: {}]
  %s3 = inlined_call_operand.vmem [shape: f32[2,1,16], index: 3, kind: input, shape index: {}]
  %s4 = inlined_call_operand.hbm [shape: f32[2,4,32], index: 4, kind: output, shape index: {0}]
  %s5 = inlined_call_operand.hbm [shape: f32[2,4,4], index: 5, kind: output, shape index: {1}]
  %s6 = inlined_call_operand.hbm [shape: f32[2,4,16], index: 6, kind: output, shape index: {2}]
  %s7 = inlined_call_operand.hbm [shape: f32[2,4,16], index: 7, kind: output, shape index: {3}]
  %8 = xla_tuple %s4, %s5, %s6, %s7
  %s9 = sld [smem:[#allocation0]]
  $region81: #{random_pool_forward.1} parent=0
    _
  %s11 = ssub.s32 1, %s9
  %s12 = scalar_select 0, %s11, %s9
  $region1: #{random_pool_forward.1} parent=0
    #allocation2 [shape = 'u8[16384]{0}', space=vmem, size = 0x4000, scoped, tag = 'input window, operand 1']
    #allocation3 [shape = 's32[2]{0}', space=sflag, size = 0x8, scoped, tag = 'scoped memory for random_pool_forward.1']
    #allocation4 [shape = 's32[2]{0}', space=sflag, size = 0x8, scoped, tag = 'scoped memory for random_pool_forward.1']
    #allocation5 [shape = 'u8[8192]{0}', space=vmem, size = 0x2000, scoped, tag = 'input window, operand 2']
    #allocation6 [shape = 's32[2]{0}', space=sflag, size = 0x8, scoped, tag = 'scoped memory for random_pool_forward.1']
    #allocation7 [shape = 'u8[4096]{0}', space=vmem, size = 0x1000, scoped, tag = 'output window, operand 0']
    #allocation8 [shape = 'u8[4096]{0}', space=vmem, size = 0x1000, scoped, tag = 'output window, operand 1']
    #allocation9 [shape = 's32[2]{0}', space=sflag, size = 0x8, scoped, tag = 'scoped memory for random_pool_forward.1']
    #allocation10 [shape = 'u8[4096]{0}', space=vmem, size = 0x1000, scoped, tag = 'output window, operand 2']
    #allocation11 [shape = 'u8[4096]{0}', space=vmem, size = 0x1000, scoped, tag = 'output window, operand 3']
    #allocation12 [shape = 's32[2]{0}', space=sflag, size = 0x8, scoped, tag = 'scoped memory for random_pool_forward.1']
    %13 = vsyncpa [#allocation3], 0
    %s14 = scalar_lea.sflag [#allocation3], 1
    %15 = vsyncpa %s14, 0
    %16 = vsyncpa [#allocation6], 0
    %s17 = scalar_lea.sflag [#allocation6], 1
    %18 = vsyncpa %s17, 0
    %19 = vsyncpa [#allocation4], 0
    %s20 = scalar_lea.sflag [#allocation4], 1
    %21 = vsyncpa %s20, 0
    %22 = vsyncpa [#allocation9], 0
    %s23 = scalar_lea.sflag [#allocation9], 1
    %24 = vsyncpa %s23, 0
    %25 = vsyncpa [#allocation12], 0
    %s26 = scalar_lea.sflag [#allocation12], 1
    %27 = vsyncpa %s26, 0
    loop: start=0, step=1, limit=4
    $region2: #{random_pool_forward.1} parent=1 // loop_pre_header
      _
    $region3: #{random_pool_forward.1} parent=1 // loop_header
      %s29 = sphi 0, %s33
      %p30 = scmp.ge.s32.totalorder %s29, 4
      %s37 = sphi 0, %s37
      %s39 = sphi 0, %s37
      %s40 = sphi 0, %s39
      %s54 = sphi 0, %s40
      %s60 = sphi 0, %s62
      %s63 = sphi 0, %s60
      %s64 = sphi 0, %s63
      %s80 = sphi 0, %s64
      %s86 = sphi 0, %s88
      %s89 = sphi 0, %s86
      %s90 = sphi 0, %s89
      %s106 = sphi 0, %s90
      %s112 = sphi 0, %s114
      %s115 = sphi 0, %s112
      %s116 = sphi 0, %s115
      %s132 = sphi 0, %s116
      %s138 = sphi 0, %s140
      %s141 = sphi 0, %s138
      %s142 = sphi 0, %s141
      %s158 = sphi 0, %s142
      %s164 = sphi 0, %s166
      %s167 = sphi 0, %s164
      %s168 = sphi 0, %s167
      %s184 = sphi 0, %s168
      %s190 = sphi 0, %s192
      %s193 = sphi 0, %s190
      %s194 = sphi 0, %s193
      %s210 = sphi 0, %s194
      %s216 = sphi 0, %s218
      %s219 = sphi 0, %s216
      %s220 = sphi 0, %s219
      %s236 = sphi 0, %s220
    $region4: #{random_pool_forward.1} parent=1 // loop_header_branch
      %32 = sbr.rel (%p30) target = $region8
    $region5: #{random_pool_forward.1} parent=1 // loop_body
      %s34 = ssub.s32 %s29, 1
      %s35 = ssub.s32 %s29, 2
      %s36 = sadd.s32 %s29, 1
      %s38 = sadd.s32 %s37, 1
      %p41 = scmp.eq.s32.totalorder %s29, 1
      %p42 = scmp.ne.s32.totalorder %s37, %s39
      %p43 = scmp.eq.s32.totalorder %s29, 0
      %p44 = por %p42, %p43
      %p45 = scmp.ne.s32.totalorder %s37, %s39
      %p46 = scmp.eq.s32.totalorder %s34, 1
      %p47 = por %p45, %p46
      %p48 = scmp.ne.s32.totalorder %s39, %s40
      %p49 = scmp.eq.s32.totalorder %s34, 0
      %p50 = por %p48, %p49
      %p51 = scmp.ne.s32.totalorder %s39, %s40
      %p52 = scmp.eq.s32.totalorder %s35, 1
      %p53 = por %p51, %p52
      %p55 = scmp.ne.s32.totalorder %s40, %s54
      %p56 = scmp.eq.s32.totalorder %s35, 0
      %p57 = por %p55, %p56
      %s58 = ssub.s32 %s29, %s36
      %p59 = scmp.eq.s32.totalorder %s58, 0
      %s61 = sadd.s32 %s60, 1
      %s62 = scalar_select %p59, %s60, %s61
      %p65 = pneg %p59
      %p66 = scmp.eq.s32.totalorder %s29, 1
      %p67 = por %p65, %p66
      %p68 = scmp.ne.s32.totalorder %s60, %s63
      %p69 = scmp.eq.s32.totalorder %s29, 0
      %p70 = por %p68, %p69
      %p71 = scmp.ne.s32.totalorder %s60, %s63
      %p72 = scmp.eq.s32.totalorder %s34, 1
      %p73 = por %p71, %p72
      %p74 = scmp.ne.s32.totalorder %s63, %s64
      %p75 = scmp.eq.s32.totalorder %s34, 0
      %p76 = por %p74, %p75
      %p77 = scmp.ne.s32.totalorder %s63, %s64
      %p78 = scmp.eq.s32.totalorder %s35, 1
      %p79 = por %p77, %p78
      %p81 = scmp.ne.s32.totalorder %s64, %s80
      %p82 = scmp.eq.s32.totalorder %s35, 0
      %p83 = por %p81, %p82
      %s84 = ssub.s32 %s29, %s36
      %p85 = scmp.eq.s32.totalorder %s84, 0
      %s87 = sadd.s32 %s86, 1
      %s88 = scalar_select %p85, %s86, %s87
      %p91 = pneg %p85
      %p92 = scmp.eq.s32.totalorder %s29, 1
      %p93 = por %p91, %p92
      %p94 = scmp.ne.s32.totalorder %s86, %s89
      %p95 = scmp.eq.s32.totalorder %s29, 0
      %p96 = por %p94, %p95
      %p97 = scmp.ne.s32.totalorder %s86, %s89
      %p98 = scmp.eq.s32.totalorder %s34, 1
      %p99 = por %p97, %p98
      %p100 = scmp.ne.s32.totalorder %s89, %s90
      %p101 = scmp.eq.s32.totalorder %s34, 0
      %p102 = por %p100, %p101
      %p103 = scmp.ne.s32.totalorder %s89, %s90
      %p104 = scmp.eq.s32.totalorder %s35, 1
      %p105 = por %p103, %p104
      %p107 = scmp.ne.s32.totalorder %s90, %s106
      %p108 = scmp.eq.s32.totalorder %s35, 0
      %p109 = por %p107, %p108
      %s110 = ssub.s32 %s29, %s36
      %p111 = scmp.eq.s32.totalorder %s110, 0
      %s113 = sadd.s32 %s112, 1
      %s114 = scalar_select %p111, %s112, %s113
      %p117 = pneg %p111
      %p118 = scmp.eq.s32.totalorder %s29, 1
      %p119 = por %p117, %p118
      %p120 = scmp.ne.s32.totalorder %s112, %s115
      %p121 = scmp.eq.s32.totalorder %s29, 0
      %p122 = por %p120, %p121
      %p123 = scmp.ne.s32.totalorder %s112, %s115
      %p124 = scmp.eq.s32.totalorder %s34, 1
      %p125 = por %p123, %p124
      %p126 = scmp.ne.s32.totalorder %s115, %s116
      %p127 = scmp.eq.s32.totalorder %s34, 0
      %p128 = por %p126, %p127
      %p129 = scmp.ne.s32.totalorder %s115, %s116
      %p130 = scmp.eq.s32.totalorder %s35, 1
      %p131 = por %p129, %p130
      %p133 = scmp.ne.s32.totalorder %s116, %s132
      %p134 = scmp.eq.s32.totalorder %s35, 0
      %p135 = por %p133, %p134
      %s136 = ssub.s32 %s29, %s36
      %p137 = scmp.eq.s32.totalorder %s136, 0
      %s139 = sadd.s32 %s138, 1
      %s140 = scalar_select %p137, %s138, %s139
      %p143 = pneg %p137
      %p144 = scmp.eq.s32.totalorder %s29, 1
      %p145 = por %p143, %p144
      %p146 = scmp.ne.s32.totalorder %s138, %s141
      %p147 = scmp.eq.s32.totalorder %s29, 0
      %p148 = por %p146, %p147
      %p149 = scmp.ne.s32.totalorder %s138, %s141
      %p150 = scmp.eq.s32.totalorder %s34, 1
      %p151 = por %p149, %p150
      %p152 = scmp.ne.s32.totalorder %s141, %s142
      %p153 = scmp.eq.s32.totalorder %s34, 0
      %p154 = por %p152, %p153
      %p155 = scmp.ne.s32.totalorder %s141, %s142
      %p156 = scmp.eq.s32.totalorder %s35, 1
      %p157 = por %p155, %p156
      %p159 = scmp.ne.s32.totalorder %s142, %s158
      %p160 = scmp.eq.s32.totalorder %s35, 0
      %p161 = por %p159, %p160
      %s162 = ssub.s32 %s29, %s36
      %p163 = scmp.eq.s32.totalorder %s162, 0
      %s165 = sadd.s32 %s164, 1
      %s166 = scalar_select %p163, %s164, %s165
      %p169 = pneg %p163
      %p170 = scmp.eq.s32.totalorder %s29, 1
      %p171 = por %p169, %p170
      %p172 = scmp.ne.s32.totalorder %s164, %s167
      %p173 = scmp.eq.s32.totalorder %s29, 0
      %p174 = por %p172, %p173
      %p175 = scmp.ne.s32.totalorder %s164, %s167
      %p176 = scmp.eq.s32.totalorder %s34, 1
      %p177 = por %p175, %p176
      %p178 = scmp.ne.s32.totalorder %s167, %s168
      %p179 = scmp.eq.s32.totalorder %s34, 0
      %p180 = por %p178, %p179
      %p181 = scmp.ne.s32.totalorder %s167, %s168
      %p182 = scmp.eq.s32.totalorder %s35, 1
      %p183 = por %p181, %p182
      %p185 = scmp.ne.s32.totalorder %s168, %s184
      %p186 = scmp.eq.s32.totalorder %s35, 0
      %p187 = por %p185, %p186
      %s188 = ssub.s32 %s29, %s36
      %p189 = scmp.eq.s32.totalorder %s188, 0
      %s191 = sadd.s32 %s190, 1
      %s192 = scalar_select %p189, %s190, %s191
      %p195 = pneg %p189
      %p196 = scmp.eq.s32.totalorder %s29, 1
      %p197 = por %p195, %p196
      %p198 = scmp.ne.s32.totalorder %s190, %s193
      %p199 = scmp.eq.s32.totalorder %s29, 0
      %p200 = por %p198, %p199
      %p201 = scmp.ne.s32.totalorder %s190, %s193
      %p202 = scmp.eq.s32.totalorder %s34, 1
      %p203 = por %p201, %p202
      %p204 = scmp.ne.s32.totalorder %s193, %s194
      %p205 = scmp.eq.s32.totalorder %s34, 0
      %p206 = por %p204, %p205
      %p207 = scmp.ne.s32.totalorder %s193, %s194
      %p208 = scmp.eq.s32.totalorder %s35, 1
      %p209 = por %p207, %p208
      %p211 = scmp.ne.s32.totalorder %s194, %s210
      %p212 = scmp.eq.s32.totalorder %s35, 0
      %p213 = por %p211, %p212
      %s214 = ssub.s32 %s29, %s36
      %p215 = scmp.eq.s32.totalorder %s214, 0
      %s217 = sadd.s32 %s216, 1
      %s218 = scalar_select %p215, %s216, %s217
      %p221 = pneg %p215
      %p222 = scmp.eq.s32.totalorder %s29, 1
      %p223 = por %p221, %p222
      %p224 = scmp.ne.s32.totalorder %s216, %s219
      %p225 = scmp.eq.s32.totalorder %s29, 0
      %p226 = por %p224, %p225
      %p227 = scmp.ne.s32.totalorder %s216, %s219
      %p228 = scmp.eq.s32.totalorder %s34, 1
      %p229 = por %p227, %p228
      %p230 = scmp.ne.s32.totalorder %s219, %s220
      %p231 = scmp.eq.s32.totalorder %s34, 0
      %p232 = por %p230, %p231
      %p233 = scmp.ne.s32.totalorder %s219, %s220
      %p234 = scmp.eq.s32.totalorder %s35, 1
      %p235 = por %p233, %p234
      %p237 = scmp.ne.s32.totalorder %s220, %s236
      %p238 = scmp.eq.s32.totalorder %s35, 0
      %p239 = por %p237, %p238
      %p240 = scmp.le.s32.totalorder 1, %s29
      %p241 = scmp.lt.s32.totalorder %s29, 3
      %p242 = pnand %p240, %p241
      %p243 = pneg %p242
      // Predicated region
      $region9: #{random_pool_forward.1} parent=5 // pred_check
        _
      $region10: #{random_pool_forward.1} parent=5 // pred_check_branch
        %245 = sbr.rel (%p242) target = $region12
      $region11: #{random_pool_forward.1} parent=5 // pred_region
        %s246 = ssub.s32 %s29, 1
        // Predicated region
        $region13: #{random_pool_forward.1} parent=11 // pred_check
          %p247 = pneg %p50
        $region14: #{random_pool_forward.1} parent=11 // pred_check_branch
          %249 = sbr.rel (%p247) target = $region16
        $region15: #{random_pool_forward.1} parent=11 // pred_region
          _
        $region16: #{random_pool_forward.1} parent=11 // pred_fallthru
          _
      $region12: #{random_pool_forward.1} parent=5 // pred_fallthru
        _
      %p250 = scmp.lt.s32.totalorder %s29, 2
      // Predicated region
      $region17: #{random_pool_forward.1} parent=5 // pred_check
        %p251 = pneg %p250
      $region18: #{random_pool_forward.1} parent=5 // pred_check_branch
        %253 = sbr.rel (%p251) target = $region20
      $region19: #{random_pool_forward.1} parent=5 // pred_region
        // Predicated region
        $region21: #{random_pool_forward.1} parent=19 // pred_check
          %p254 = pneg %p70
        $region22: #{random_pool_forward.1} parent=19 // pred_check_branch
          %256 = sbr.rel (%p254) target = $region24
        $region23: #{random_pool_forward.1} parent=19 // pred_region
          %s257 = sand.u32 %s60, 1
          %s258 = scalar_lea.sflag [#allocation3], %s257
          %s259 = sand.u32 %s60, 1
          %s260 = smul.addr %s259, 16
          %s261 = scalar_lea.vmem [#allocation2], %s260
          %s263 = ssub.s32 256, 256
          %264 = vsyncadd %s258, %s263
          %s265 = smul.addr %s29, 2
          %s266 = smul.addr %s265, 128
          %s267 = scalar_lea.hbm %s1, %s266
          %s268 = sshll.u32 %s261, 4
          %s269 = int_to_ptr.vmem [resolvable:$true] %s268
          %274 = dma.hbm_to_vmem [thread:$0]  %s267, 256, %s269, %s258, 128, 128, 8
        $region24: #{random_pool_forward.1} parent=19 // pred_fallthru
          _
        // Predicated region
        $region25: #{random_pool_forward.1} parent=19 // pred_check
          %p275 = pneg %p96
        $region26: #{random_pool_forward.1} parent=19 // pred_check_branch
          %277 = sbr.rel (%p275) target = $region28
        $region27: #{random_pool_forward.1} parent=19 // pred_region
          %s278 = sand.u32 %s86, 1
          %s279 = scalar_lea.sflag [#allocation6], %s278
          %s280 = sand.u32 %s86, 1
          %s281 = smul.addr %s280, 8
          %s282 = scalar_lea.vmem [#allocation5], %s281
          %s284 = ssub.s32 128, 128
          %285 = vsyncadd %s279, %s284
          %s286 = smul.addr %s29, 2
          %s287 = smul.addr %s286, 64
          %s288 = scalar_lea.hbm %s2, %s287
          %s289 = sshll.u32 %s282, 4
          %s290 = int_to_ptr.vmem [resolvable:$true] %s289
          %295 = dma.hbm_to_vmem [thread:$0]  %s288, 128, %s290, %s279, 64, 64, 4
        $region28: #{random_pool_forward.1} parent=19 // pred_fallthru
          _
        // Predicated region
        $region29: #{random_pool_forward.1} parent=19 // pred_check
          %p296 = pneg %p122
        $region30: #{random_pool_forward.1} parent=19 // pred_check_branch
          %298 = sbr.rel (%p296) target = $region32
        $region31: #{random_pool_forward.1} parent=19 // pred_region
          %p299 = scmp.lt.s32.totalorder %s29, 1
          %s300 = scalar_select %p299, %s29, 1
          %s301 = scalar_lea.vmem %s3, %s300
        $region32: #{random_pool_forward.1} parent=19 // pred_fallthru
          _
      $region20: #{random_pool_forward.1} parent=5 // pred_fallthru
        _
      %p302 = scmp.le.s32.totalorder 1, %s29
      %p303 = scmp.lt.s32.totalorder %s29, 3
      %p304 = pnand %p302, %p303
      %p305 = pneg %p304
      // Predicated region
      $region33: #{random_pool_forward.1} parent=5 // pred_check
        _
      $region34: #{random_pool_forward.1} parent=5 // pred_check_branch
        %307 = sbr.rel (%p304) target = $region36
      $region35: #{random_pool_forward.1} parent=5 // pred_region
        %s308 = ssub.s32 %s29, 1
        %s309 = sand.u32 %s63, 1
        %s310 = scalar_lea.sflag [#allocation3], %s309
        %s311 = sand.u32 %s63, 1
        %s312 = smul.addr %s311, 16
        %s313 = scalar_lea.vmem [#allocation2], %s312
        // Predicated region
        $region37: #{random_pool_forward.1} parent=35 // pred_check
          %p314 = pneg %p76
        $region38: #{random_pool_forward.1} parent=35 // pred_check_branch
          %316 = sbr.rel (%p314) target = $region40
        $region39: #{random_pool_forward.1} parent=35 // pred_region
          %317 = dma.done %s310, 256
        $region40: #{random_pool_forward.1} parent=35 // pred_fallthru
          _
        %s318 = sand.u32 %s89, 1
        %s319 = scalar_lea.sflag [#allocation6], %s318
        %s320 = sand.u32 %s89, 1
        %s321 = smul.addr %s320, 8
        %s322 = scalar_lea.vmem [#allocation5], %s321
        // Predicated region
        $region41: #{random_pool_forward.1} parent=35 // pred_check
          %p323 = pneg %p102
        $region42: #{random_pool_forward.1} parent=35 // pred_check_branch
          %325 = sbr.rel (%p323) target = $region44
        $region43: #{random_pool_forward.1} parent=35 // pred_region
          %326 = dma.done %s319, 128
        $region44: #{random_pool_forward.1} parent=35 // pred_fallthru
          _
        %p327 = pneg %p50
        %p328 = pneg %p47
        %s329 = sand.u32 %s63, 1
        %s330 = scalar_lea.sflag [#allocation3], %s329
        %s331 = sand.u32 %s63, 1
        %s332 = smul.addr %s331, 16
        %s333 = scalar_lea.vmem [#allocation2], %s332
        %p334 = pneg %p76
        %p335 = pneg %p73
        %s336 = sand.u32 %s89, 1
        %s337 = scalar_lea.sflag [#allocation6], %s336
        %s338 = sand.u32 %s89, 1
        %s339 = smul.addr %s338, 8
        %s340 = scalar_lea.vmem [#allocation5], %s339
        %p341 = pneg %p102
        %p342 = pneg %p99
        %p343 = scmp.lt.s32.totalorder %s34, 1
        %s344 = scalar_select %p343, %s34, 1
        %s345 = scalar_lea.vmem %s3, %s344
        %p346 = pneg %p128
        %p347 = pneg %p125
        %p348 = pneg %p154
        %p349 = pneg %p151
        %s350 = sand.u32 %s141, 1
        %s351 = scalar_lea.sflag [#allocation4], %s350
        %s352 = sand.u32 %s141, 1
        %s353 = smul.addr %s352, 4
        %s354 = scalar_lea.vmem [#allocation7], %s353
        %p355 = pneg %p180
        %p356 = pneg %p177
        %s357 = sand.u32 %s34, 1
        %s358 = scalar_lea.sflag [#allocation9], %s357
        %s359 = sand.u32 %s167, 1
        %s360 = smul.addr %s359, 4
        %s361 = scalar_lea.vmem [#allocation8], %s360
        %p362 = pneg %p206
        %p363 = pneg %p203
        %s364 = sand.u32 %s34, 1
        %s365 = scalar_lea.sflag [#allocation9], %s364
        %s366 = sand.u32 %s193, 1
        %s367 = smul.addr %s366, 4
        %s368 = scalar_lea.vmem [#allocation10], %s367
        %p369 = pneg %p232
        %p370 = pneg %p229
        %s371 = sand.u32 %s219, 1
        %s372 = scalar_lea.sflag [#allocation12], %s371
        %s373 = sand.u32 %s219, 1
        %s374 = smul.addr %s373, 4
        %s375 = scalar_lea.vmem [#allocation11], %s374
        %p376 = scmp.lt.s32.totalorder %s34, 1
        %s377 = scalar_select %p376, %s34, 1
        %s378 = scalar_lea.vmem %s3, %s377
        %v379 = vld [vmem:[%s0] sm:$0xf]
        %v380 = vld [vmem:[%s378] sm:$0x1]
        %v382 = vlaneseq
        %v383 = vshrl.u32 %v382, 7
        %v384 = vsub.s32 0, %v383
        %v385 = vrot.slane %v380, %v384
        %v387 = vmul.f32 %v379, %v385
        %v388 = vmax.f32 %v387, 0.0
        %vm389 = vcmask 125952
        %v390 = vsel %vm389, %v388, 0.0
        %391 = vadd.xlane.f32.xlu0 %v390
        %v392 = vpop.xlane.xlu0 %391
        %v393 = vadd.f32 %v392, 1e-15
        %v394 = vrcp.pop %v393
        %v395 = vmul.f32 %v388, %v394
        %v396 = vrot.slane %v390, 4
        %v397 = vadd.f32 %v390, %v396
        %v398 = vrot.slane %v397, 2
        %v399 = vadd.f32 %v397, %v398
        %v400 = vrot.slane %v399, 1
        %v401 = vadd.f32 %v399, %v400
        %v402 = vadd.f32 %v401, 1e-15
        %v403 = vrcp.pop %v402
        %v404 = vmul.f32 %v388, %v403
        %v405 = vld [vmem:[%s313] sm:$0xff]
        %v406 = vld [vmem:[%s313 + $0x8] sm:$0xff]
        %v407 = vld [vmem:[%s322] sm:$0xf]
        %v408 = vld [vmem:[%s322 + $0x4] sm:$0xf]
        %v409 = vunpack.c.l.bf16 %v407
        %v410 = vunpack.c.l.bf16 %v408
        %vm411 = vcmask 130048
        %v413 = vsel %vm411, %v395, 0
        %415 = vmatprep.subr.mxu0 0.0
        %416 = vmatpush1.msra.mxu0 %v405
        %417 = vmatprep.subr.mxu0 0.0
        %418 = vmatpush1.msra.mxu0 %v406
        %419 = vmatprep.subr.mxu0 0.0
        %420 = vmatpush1.msra.mxu0 0.0
        %421 = vmatprep.subr.mxu0 0.0
        %422 = vmatpush1.msra.mxu0 0.0
        %423 = vmatprep.subr.mxu0 0.0
        %424 = vmatpush1.msra.mxu0 0.0
        %425 = vmatprep.subr.mxu0 0.0
        %426 = vmatpush1.msra.mxu0 0.0
        %427 = vmatprep.subr.mxu0 0.0
        %428 = vmatpush1.msra.mxu0 0.0
        %429 = vmatprep.subr.mxu0 0.0
        %430 = vmatpush1.msra.mxu0 0.0
        %431 = vmatprep.subr.mxu0 0.0
        %432 = vmatpush1.msra.mxu0 0.0
        %433 = vmatprep.subr.mxu0 0.0
        %434 = vmatpush1.msra.mxu0 0.0
        %435 = vmatprep.subr.mxu0 0.0
        %436 = vmatpush1.msra.mxu0 0.0
        %437 = vmatprep.subr.mxu0 0.0
        %438 = vmatpush1.msra.mxu0 0.0
        %439 = vmatprep.subr.mxu0 0.0
        %440 = vmatpush1.msra.mxu0 0.0
        %441 = vmatprep.subr.mxu0 0.0
        %442 = vmatpush1.msra.mxu0 0.0
        %443 = vmatprep.subr.mxu0 0.0
        %444 = vmatpush1.msra.mxu0 0.0
        %445 = vmatprep.subr.mxu0 0.0
        %446 = vmatpush1.msra.mxu0 0.0
        %447 = vmatprep.subr.mxu0 0.0
        %448 = vmatpush1.msra.mxu0 0.0
        %449 = vmatprep.subr.mxu0 0.0
        %450 = vmatpush1.msra.mxu0 0.0
        %451 = vmatprep.subr.mxu0 0.0
        %452 = vmatpush1.msra.mxu0 0.0
        %453 = vmatprep.subr.mxu0 0.0
        %454 = vmatpush1.msra.mxu0 0.0
        %455 = vmatprep.subr.mxu0 0.0
        %456 = vmatpush1.msra.mxu0 0.0
        %457 = vmatprep.subr.mxu0 0.0
        %458 = vmatpush1.msra.mxu0 0.0
        %459 = vmatprep.subr.mxu0 0.0
        %460 = vmatpush1.msra.mxu0 0.0
        %461 = vmatprep.subr.mxu0 0.0
        %462 = vmatpush1.msra.mxu0 0.0
        %463 = vmatprep.subr.mxu0 0.0
        %464 = vmatpush1.msra.mxu0 0.0
        %465 = vmatprep.subr.mxu0 0.0
        %466 = vmatpush1.msra.mxu0 0.0
        %467 = vmatprep.subr.mxu0 0.0
        %468 = vmatpush1.msra.mxu0 0.0
        %469 = vmatprep.subr.mxu0 0.0
        %470 = vmatpush1.msra.mxu0 0.0
        %471 = vmatprep.subr.mxu0 0.0
        %472 = vmatpush1.msra.mxu0 0.0
        %473 = vmatprep.subr.mxu0 0.0
        %474 = vmatpush1.msra.mxu0 0.0
        %475 = vmatprep.subr.mxu0 0.0
        %476 = vmatpush1.msra.mxu0 0.0
        %477 = vmatprep.subr.mxu0 0.0
        %478 = vmatpush1.msra.mxu0 0.0
        %479 = vmatprep.mubr.f32.mxu0 0.0
        %480 = vmatmul.mubr.f32.gmra.mrb[0].mxu0 %v413
        %v481 = vpop.f32.mrb[0].mxu0
        %v482 = vadd.f32 0.0, %v481
        %v483 = vpop.f32.mrb[0].mxu0
        %484 = vdwg.mxu0
        %485 = vmatprep.subr.mxu0 0.0
        %486 = vmatpush1.msra.mxu0 %v409
        %487 = vmatprep.subr.mxu0 0.0
        %488 = vmatpush1.msra.mxu0 %v410
        %489 = vmatprep.subr.mxu0 0.0
        %490 = vmatpush1.msra.mxu0 0.0
        %491 = vmatprep.subr.mxu0 0.0
        %492 = vmatpush1.msra.mxu0 0.0
        %493 = vmatprep.subr.mxu0 0.0
        %494 = vmatpush1.msra.mxu0 0.0
        %495 = vmatprep.subr.mxu0 0.0
        %496 = vmatpush1.msra.mxu0 0.0
        %497 = vmatprep.subr.mxu0 0.0
        %498 = vmatpush1.msra.mxu0 0.0
        %499 = vmatprep.subr.mxu0 0.0
        %500 = vmatpush1.msra.mxu0 0.0
        %501 = vmatprep.subr.mxu0 0.0
        %502 = vmatpush1.msra.mxu0 0.0
        %503 = vmatprep.subr.mxu0 0.0
        %504 = vmatpush1.msra.mxu0 0.0
        %505 = vmatprep.subr.mxu0 0.0
        %506 = vmatpush1.msra.mxu0 0.0
        %507 = vmatprep.subr.mxu0 0.0
        %508 = vmatpush1.msra.mxu0 0.0
        %509 = vmatprep.subr.mxu0 0.0
        %510 = vmatpush1.msra.mxu0 0.0
        %511 = vmatprep.subr.mxu0 0.0
        %512 = vmatpush1.msra.mxu0 0.0
        %513 = vmatprep.subr.mxu0 0.0
        %514 = vmatpush1.msra.mxu0 0.0
        %515 = vmatprep.subr.mxu0 0.0
        %516 = vmatpush1.msra.mxu0 0.0
        %517 = vmatprep.subr.mxu0 0.0
        %518 = vmatpush1.msra.mxu0 0.0
        %519 = vmatprep.subr.mxu0 0.0
        %520 = vmatpush1.msra.mxu0 0.0
        %521 = vmatprep.subr.mxu0 0.0
        %522 = vmatpush1.msra.mxu0 0.0
        %523 = vmatprep.subr.mxu0 0.0
        %524 = vmatpush1.msra.mxu0 0.0
        %525 = vmatprep.subr.mxu0 0.0
        %526 = vmatpush1.msra.mxu0 0.0
        %527 = vmatprep.subr.mxu0 0.0
        %528 = vmatpush1.msra.mxu0 0.0
        %529 = vmatprep.subr.mxu0 0.0
        %530 = vmatpush1.msra.mxu0 0.0
        %531 = vmatprep.subr.mxu0 0.0
        %532 = vmatpush1.msra.mxu0 0.0
        %533 = vmatprep.subr.mxu0 0.0
        %534 = vmatpush1.msra.mxu0 0.0
        %535 = vmatprep.subr.mxu0 0.0
        %536 = vmatpush1.msra.mxu0 0.0
        %537 = vmatprep.subr.mxu0 0.0
        %538 = vmatpush1.msra.mxu0 0.0
        %539 = vmatprep.subr.mxu0 0.0
        %540 = vmatpush1.msra.mxu0 0.0
        %541 = vmatprep.subr.mxu0 0.0
        %542 = vmatpush1.msra.mxu0 0.0
        %543 = vmatprep.subr.mxu0 0.0
        %544 = vmatpush1.msra.mxu0 0.0
        %545 = vmatprep.subr.mxu0 0.0
        %546 = vmatpush1.msra.mxu0 0.0
        %547 = vmatprep.subr.mxu0 0.0
        %548 = vmatpush1.msra.mxu0 0.0
        %549 = vmatprep.mubr.f32.mxu0 0.0
        %550 = vmatmul.mubr.f32.gmra.mrb[0].mxu0 %v413
        %v551 = vpop.f32.mrb[0].mxu0
        %v552 = vadd.f32 0.0, %v551
        %v553 = vpop.f32.mrb[0].mxu0
        %554 = vdwg.mxu0
        %v556 = vsel %vm411, %v552, 0
        %v559 = vsel %vm411, %v404, 0
        %561 = vmatprep.subr.mxu0 0.0
        %562 = vmatpush1.xpose.msra.mxu0 %v559
        %563 = vmatprep.subr.mxu0 0.0
        %564 = vmatpush1.xpose.msra.mxu0 0.0
        %565 = vmatprep.subr.mxu0 0.0
        %566 = vmatpush1.xpose.msra.mxu0 0.0
        %567 = vmatprep.subr.mxu0 0.0
        %568 = vmatpush1.xpose.msra.mxu0 0.0
        %569 = vmatprep.subr.mxu0 0.0
        %570 = vmatpush1.xpose.msra.mxu0 0.0
        %571 = vmatprep.subr.mxu0 0.0
        %572 = vmatpush1.xpose.msra.mxu0 0.0
        %573 = vmatprep.subr.mxu0 0.0
        %574 = vmatpush1.xpose.msra.mxu0 0.0
        %575 = vmatprep.subr.mxu0 0.0
        %576 = vmatpush1.xpose.msra.mxu0 0.0
        %577 = vmatprep.subr.mxu0 0.0
        %578 = vmatpush1.xpose.msra.mxu0 0.0
        %579 = vmatprep.subr.mxu0 0.0
        %580 = vmatpush1.xpose.msra.mxu0 0.0
        %581 = vmatprep.subr.mxu0 0.0
        %582 = vmatpush1.xpose.msra.mxu0 0.0
        %583 = vmatprep.subr.mxu0 0.0
        %584 = vmatpush1.xpose.msra.mxu0 0.0
        %585 = vmatprep.subr.mxu0 0.0
        %586 = vmatpush1.xpose.msra.mxu0 0.0
        %587 = vmatprep.subr.mxu0 0.0
        %588 = vmatpush1.xpose.msra.mxu0 0.0
        %589 = vmatprep.subr.mxu0 0.0
        %590 = vmatpush1.xpose.msra.mxu0 0.0
        %591 = vmatprep.subr.mxu0 0.0
        %592 = vmatpush1.xpose.msra.mxu0 0.0
        %593 = vmatprep.subr.mxu0 0.0
        %594 = vmatpush1.xpose.msra.mxu0 0.0
        %595 = vmatprep.subr.mxu0 0.0
        %596 = vmatpush1.xpose.msra.mxu0 0.0
        %597 = vmatprep.subr.mxu0 0.0
        %598 = vmatpush1.xpose.msra.mxu0 0.0
        %599 = vmatprep.subr.mxu0 0.0
        %600 = vmatpush1.xpose.msra.mxu0 0.0
        %601 = vmatprep.subr.mxu0 0.0
        %602 = vmatpush1.xpose.msra.mxu0 0.0
        %603 = vmatprep.subr.mxu0 0.0
        %604 = vmatpush1.xpose.msra.mxu0 0.0
        %605 = vmatprep.subr.mxu0 0.0
        %606 = vmatpush1.xpose.msra.mxu0 0.0
        %607 = vmatprep.subr.mxu0 0.0
        %608 = vmatpush1.xpose.msra.mxu0 0.0
        %609 = vmatprep.subr.mxu0 0.0
        %610 = vmatpush1.xpose.msra.mxu0 0.0
        %611 = vmatprep.subr.mxu0 0.0
        %612 = vmatpush1.xpose.msra.mxu0 0.0
        %613 = vmatprep.subr.mxu0 0.0
        %614 = vmatpush1.xpose.msra.mxu0 0.0
        %615 = vmatprep.subr.mxu0 0.0
        %616 = vmatpush1.xpose.msra.mxu0 0.0
        %617 = vmatprep.subr.mxu0 0.0
        %618 = vmatpush1.xpose.msra.mxu0 0.0
        %619 = vmatprep.subr.mxu0 0.0
        %620 = vmatpush1.xpose.msra.mxu0 0.0
        %621 = vmatprep.subr.mxu0 0.0
        %622 = vmatpush1.xpose.msra.mxu0 0.0
        %623 = vmatprep.subr.mxu0 0.0
        %624 = vmatpush1.xpose.msra.mxu0 0.0
        %625 = vmatprep.mubr.f32.mxu0 0.0
        %626 = vmatmul.mubr.f32.gmra.mrb[0].mxu0 %v556
        %v627 = vpop.f32.mrb[0].mxu0
        %v628 = vadd.f32 0.0, %v627
        %v629 = vpop.f32.mrb[0].mxu0
        %630 = vdwg.mxu0
        %vm631 = vcmask 257024
        %632 = vst.msk [vmem:[%s354] sm:$0xf] %vm631, %v482
        %vm633 = vcmask 27648
        %634 = vst.msk [vmem:[%s361] sm:$0xf] %vm633, %v628
        %635 = vst.msk [vmem:[%s368] sm:$0xf] %vm389, %v404
        %636 = vst.msk [vmem:[%s375] sm:$0xf] %vm389, %v395
        %s637 = sand.u32 %s141, 1
        %s638 = scalar_lea.sflag [#allocation4], %s637
        %s639 = sand.u32 %s141, 1
        %s640 = smul.addr %s639, 4
        %s641 = scalar_lea.vmem [#allocation7], %s640
        %s642 = sand.u32 %s34, 1
        %s643 = scalar_lea.sflag [#allocation9], %s642
        %s644 = sand.u32 %s167, 1
        %s645 = smul.addr %s644, 4
        %s646 = scalar_lea.vmem [#allocation8], %s645
        %s647 = sand.u32 %s34, 1
        %s648 = scalar_lea.sflag [#allocation9], %s647
        %s649 = sand.u32 %s193, 1
        %s650 = smul.addr %s649, 4
        %s651 = scalar_lea.vmem [#allocation10], %s650
        %s652 = sand.u32 %s219, 1
        %s653 = scalar_lea.sflag [#allocation12], %s652
        %s654 = sand.u32 %s219, 1
        %s655 = smul.addr %s654, 4
        %s656 = scalar_lea.vmem [#allocation11], %s655
        // Predicated region
        $region45: #{random_pool_forward.1} parent=35 // pred_check
          %p657 = pneg %p151
        $region46: #{random_pool_forward.1} parent=35 // pred_check_branch
          %659 = sbr.rel (%p657) target = $region48
        $region47: #{random_pool_forward.1} parent=35 // pred_region
          %s661 = ssub.s32 64, 64
          %662 = vsyncadd %s638, %s661
          %s663 = smul.addr %s34, 64
          %s664 = scalar_lea.hbm %s4, %s663
          %s666 = sshll.u32 %s641, 4
          %s667 = int_to_ptr.vmem [resolvable:$true] %s666
          %669 = dma.vmem_to_hbm [thread:$0]  %s667, 64, %s664, %s638
        $region48: #{random_pool_forward.1} parent=35 // pred_fallthru
          _
        // Predicated region
        $region49: #{random_pool_forward.1} parent=35 // pred_check
          %p670 = pneg %p177
        $region50: #{random_pool_forward.1} parent=35 // pred_check_branch
          %672 = sbr.rel (%p670) target = $region52
        $region51: #{random_pool_forward.1} parent=35 // pred_region
          %s674 = ssub.s32 64, 64
          %675 = vsyncadd %s643, %s674
          %s676 = smul.addr %s34, 64
          %s677 = scalar_lea.hbm %s5, %s676
          %s679 = sshll.u32 %s646, 4
          %s680 = int_to_ptr.vmem [resolvable:$true] %s679
          %682 = dma.vmem_to_hbm [thread:$0]  %s680, 64, %s677, %s643
        $region52: #{random_pool_forward.1} parent=35 // pred_fallthru
          _
        // Predicated region
        $region53: #{random_pool_forward.1} parent=35 // pred_check
          %p683 = pneg %p203
        $region54: #{random_pool_forward.1} parent=35 // pred_check_branch
          %685 = sbr.rel (%p683) target = $region56
        $region55: #{random_pool_forward.1} parent=35 // pred_region
          %s687 = ssub.s32 64, 64
          %688 = vsyncadd %s648, %s687
          %s689 = smul.addr %s34, 64
          %s690 = scalar_lea.hbm %s6, %s689
          %s692 = sshll.u32 %s651, 4
          %s693 = int_to_ptr.vmem [resolvable:$true] %s692
          %695 = dma.vmem_to_hbm [thread:$0]  %s693, 64, %s690, %s648
        $region56: #{random_pool_forward.1} parent=35 // pred_fallthru
          _
        // Predicated region
        $region57: #{random_pool_forward.1} parent=35 // pred_check
          %p696 = pneg %p229
        $region58: #{random_pool_forward.1} parent=35 // pred_check_branch
          %698 = sbr.rel (%p696) target = $region60
        $region59: #{random_pool_forward.1} parent=35 // pred_region
          %s700 = ssub.s32 64, 64
          %701 = vsyncadd %s653, %s700
          %s702 = smul.addr %s34, 64
          %s703 = scalar_lea.hbm %s7, %s702
          %s705 = sshll.u32 %s656, 4
          %s706 = int_to_ptr.vmem [resolvable:$true] %s705
          %708 = dma.vmem_to_hbm [thread:$0]  %s706, 64, %s703, %s653
        $region60: #{random_pool_forward.1} parent=35 // pred_fallthru
          _
      $region36: #{random_pool_forward.1} parent=5 // pred_fallthru
        _
      %p709 = scmp.le.s32.totalorder 2, %s29
      // Predicated region
      $region61: #{random_pool_forward.1} parent=5 // pred_check
        %p710 = pneg %p709
      $region62: #{random_pool_forward.1} parent=5 // pred_check_branch
        %712 = sbr.rel (%p710) target = $region64
      $region63: #{random_pool_forward.1} parent=5 // pred_region
        %s713 = ssub.s32 %s29, 2
        // Predicated region
        $region65: #{random_pool_forward.1} parent=63 // pred_check
          %p714 = pneg %p157
        $region66: #{random_pool_forward.1} parent=63 // pred_check_branch
          %716 = sbr.rel (%p714) target = $region68
        $region67: #{random_pool_forward.1} parent=63 // pred_region
          %s717 = sand.u32 %s142, 1
          %s718 = scalar_lea.sflag [#allocation4], %s717
          %s719 = sand.u32 %s142, 1
          %s720 = smul.addr %s719, 4
          %s721 = scalar_lea.vmem [#allocation7], %s720
          %722 = dma.done %s718, 64
        $region68: #{random_pool_forward.1} parent=63 // pred_fallthru
          _
        // Predicated region
        $region69: #{random_pool_forward.1} parent=63 // pred_check
          %p723 = pneg %p183
        $region70: #{random_pool_forward.1} parent=63 // pred_check_branch
          %725 = sbr.rel (%p723) target = $region72
        $region71: #{random_pool_forward.1} parent=63 // pred_region
          %s726 = sand.u32 %s35, 1
          %s727 = scalar_lea.sflag [#allocation9], %s726
          %s728 = sand.u32 %s168, 1
          %s729 = smul.addr %s728, 4
          %s730 = scalar_lea.vmem [#allocation8], %s729
          %731 = dma.done %s727, 64
        $region72: #{random_pool_forward.1} parent=63 // pred_fallthru
          _
        // Predicated region
        $region73: #{random_pool_forward.1} parent=63 // pred_check
          %p732 = pneg %p209
        $region74: #{random_pool_forward.1} parent=63 // pred_check_branch
          %734 = sbr.rel (%p732) target = $region76
        $region75: #{random_pool_forward.1} parent=63 // pred_region
          %s735 = sand.u32 %s35, 1
          %s736 = scalar_lea.sflag [#allocation9], %s735
          %s737 = sand.u32 %s194, 1
          %s738 = smul.addr %s737, 4
          %s739 = scalar_lea.vmem [#allocation10], %s738
          %740 = dma.done %s736, 64
        $region76: #{random_pool_forward.1} parent=63 // pred_fallthru
          _
        // Predicated region
        $region77: #{random_pool_forward.1} parent=63 // pred_check
          %p741 = pneg %p235
        $region78: #{random_pool_forward.1} parent=63 // pred_check_branch
          %743 = sbr.rel (%p741) target = $region80
        $region79: #{random_pool_forward.1} parent=63 // pred_region
          %s744 = sand.u32 %s220, 1
          %s745 = scalar_lea.sflag [#allocation12], %s744
          %s746 = sand.u32 %s220, 1
          %s747 = smul.addr %s746, 4
          %s748 = scalar_lea.vmem [#allocation11], %s747
          %749 = dma.done %s745, 64
        $region80: #{random_pool_forward.1} parent=63 // pred_fallthru
          _
      $region64: #{random_pool_forward.1} parent=5 // pred_fallthru
        _
    $region6: #{random_pool_forward.1} parent=1 // loop_footer
      %s33 = sadd.s32 1, %s29
    $region7: #{random_pool_forward.1} parent=1 // loop_footer_branch
      %28 = sbr.rel target = $region3
    $region8: #{random_pool_forward.1} parent=1 // loop_exit
      _
    %750 = vsyncpa [#allocation3], 1
    %s751 = scalar_lea.sflag [#allocation3], 1
    %752 = vsyncpa %s751, 1
    %753 = vsyncpa [#allocation6], 1
    %s754 = scalar_lea.sflag [#allocation6], 1
    %755 = vsyncpa %s754, 1
    %756 = vsyncpa [#allocation4], 1
    %s757 = scalar_lea.sflag [#allocation4], 1
    %758 = vsyncpa %s757, 1
    %759 = vsyncpa [#allocation9], 1
    %s760 = scalar_lea.sflag [#allocation9], 1
    %761 = vsyncpa %s760, 1
    %762 = vsyncpa [#allocation12], 1
    %s763 = scalar_lea.sflag [#allocation12], 1
    %764 = vsyncpa %s763, 1

</llo_original>
